<compile_context>
chip_gen: v6e
topology: v6e:2x2x1
jax: 0.10.0
libtpu: 0.0.40
codegen_flags: <defaults>
</compile_context>

<pallas_src>
import functools

import jax
import jax.numpy as jnp
from jax import lax
from jax.experimental import pallas as pl
from jax.experimental.pallas import tpu as pltpu

_BIG = 1e30  # masked-min sentinel (f32; not representable in bf16)


def _round_up(x, m):
    return ((x + m - 1) // m) * m


def _choose_tiles(P, tq_pref=512, tk_pref=1024):
    """Pick (P_pad, TQ, TK): padding follows the tile, TQ/TK divide P_pad."""
    p_pad = _round_up(max(P, 1), 128)
    tk = min(tk_pref, p_pad)
    p_pad = _round_up(p_pad, tk)           # tk | p_pad by construction
    # largest multiple of 128 <= tq_pref that divides p_pad
    tq = 128
    for t in range(1, p_pad // 128 + 1):
        cand = 128 * t
        if cand <= tq_pref and p_pad % cand == 0:
            tq = cand
    # guarantee >= 2 q tiles when possible so v7x can use both TensorCores
    if p_pad // tq < 2 and p_pad >= 256:
        tq = p_pad // 2                    # multiple of 64 -> valid sublane tile
    return p_pad, tq, tk


def _bh_kernel(f0q_ref, f1q_ref, f1k_ref, sq0_ref, sq1_ref, xyzq_ref, xyzk_ref,
               out_ref, minrow_ref, *, pos_thresh, neg_thresh,
               min_dist_sq_eps, num_pairs, need_col_mask):
    ki = pl.program_id(1)

    @pl.when(ki == 0)
    def _init():
        minrow_ref[...] = jnp.full_like(minrow_ref, _BIG)

    # ---- negative branch: ||f0_i - f1_j||^2 via bf16 MXU Gram + f32 norms ----
    gram = lax.dot_general(f0q_ref[...], f1k_ref[...],
                           (((1,), (1,)), ((), ())),
                           preferred_element_type=jnp.float32)        # (TQ, TK)
    dfeat = jnp.maximum(sq0_ref[...] + sq1_ref[...] - 2.0 * gram, 0.0)

    # ---- false_negative mask: exact per-coordinate xyz distances (VPU only) ----
    xq = xyzq_ref[...]                                                # (TQ, 8)
    xk = xyzk_ref[...]                                                # (8, TK)
    d2_xyz = ((xq[:, 0:1] - xk[0:1, :]) ** 2
              + (xq[:, 1:2] - xk[1:2, :]) ** 2
              + (xq[:, 2:3] - xk[2:3, :]) ** 2)
    allowed = d2_xyz > min_dist_sq_eps        # == sqrt(d2 + 1e-7) > min_dist

    if need_col_mask:  # exclude zero-padded k columns (compile-time branch)
        tk = dfeat.shape[1]
        cols = lax.broadcasted_iota(jnp.int32, (1, tk), 1) + ki * tk  # (1, TK)
        allowed = jnp.logical_and(allowed, cols < num_pairs)

    # fused mask/select/row-min -> running row-min in VMEM scratch
    minrow_ref[...] = jnp.minimum(
        minrow_ref[...],
        jnp.min(jnp.where(allowed, dfeat, jnp.float32(_BIG)),
                axis=1, keepdims=True))

    # ---- finalize on the last k tile: positive branch + per-pair terms ----
    @pl.when(ki == pl.num_programs(1) - 1)
    def _finalize():
        diff = (f0q_ref[...].astype(jnp.float32)
                - f1q_ref[...].astype(jnp.float32))                   # (TQ, Dp)
        furthest = jnp.max(diff * diff, axis=1, keepdims=True)        # (TQ, 1)
        pos_t = jnp.maximum(furthest - pos_thresh, 0.0) ** 2
        neg_t = jnp.maximum(neg_thresh - minrow_ref[...], 0.0) ** 2
        out_ref[...] = pos_t + neg_t


def batch_hard_contrastive_loss(F0, F1, positive_pairs, xyz0,
                                pos_thresh, neg_thresh, min_dist=0.15,
                                tq=512, tk=1024):
    idx0 = positive_pairs[:, 0]
    idx1 = positive_pairs[:, 1]
    # TODO(synk): fold these row gathers (and the padding) into the kernel via
    # scalar-prefetched pair indices + HBM gather DMA to avoid materializing
    # full (P, D) gathered copies in HBM before the kernel.
    posF0 = jnp.take(F0, idx0, axis=0).astype(jnp.float32)      # (P, D)
    posF1 = jnp.take(F1, idx1, axis=0).astype(jnp.float32)      # (P, D)
    subxyz0 = jnp.take(xyz0, idx0, axis=0).astype(jnp.float32)  # (P, 3)

    P, D = posF0.shape
    Dp = _round_up(D, 128)                       # lane-dense feature dim
    P_pad, TQ, TK = _choose_tiles(P, tq, tk)

    # exact f32 row norms (computed once, streamed to the kernel)
    sq0 = jnp.sum(posF0 * posF0, axis=1, keepdims=True)         # (P, 1)
    sq1 = jnp.sum(posF1 * posF1, axis=1, keepdims=True)         # (P, 1)

    # bf16 feature streams (MXU operands), f32 norms / xyz
    f0p = jnp.pad(posF0, ((0, P_pad - P), (0, Dp - D))).astype(jnp.bfloat16)
    f1p = jnp.pad(posF1, ((0, P_pad - P), (0, Dp - D))).astype(jnp.bfloat16)
    sq0p = jnp.pad(sq0, ((0, P_pad - P), (0, 0)))               # (P_pad, 1)
    sq1p = jnp.pad(sq1.T, ((0, 0), (0, P_pad - P)))             # (1, P_pad) lane-dense
    xyzq = jnp.pad(subxyz0, ((0, P_pad - P), (0, 8 - 3)))       # (P_pad, 8)
    xyzk = jnp.pad(subxyz0.T, ((0, 8 - 3), (0, P_pad - P)))     # (8, P_pad)

    kernel = functools.partial(
        _bh_kernel,
        pos_thresh=float(pos_thresh),
        neg_thresh=float(neg_thresh),
        min_dist_sq_eps=float(min_dist) ** 2 - 1e-07,
        num_pairs=P,
        need_col_mask=(P != P_pad),
    )

    grid = (P_pad // TQ, P_pad // TK)
    terms = pl.pallas_call(
        kernel,
        out_shape=jax.ShapeDtypeStruct((P_pad, 1), jnp.float32),
        grid_spec=pltpu.PrefetchScalarGridSpec(
            num_scalar_prefetch=0,
            grid=grid,
            in_specs=[
                pl.BlockSpec((TQ, Dp), lambda qi, ki: (qi, 0)),   # f0  q tile (bf16)
                pl.BlockSpec((TQ, Dp), lambda qi, ki: (qi, 0)),   # f1  q tile (bf16, pos branch)
                pl.BlockSpec((TK, Dp), lambda qi, ki: (ki, 0)),   # f1  k tile (bf16, neg branch)
                pl.BlockSpec((TQ, 1), lambda qi, ki: (qi, 0)),    # ||f0||^2 (f32)
                pl.BlockSpec((1, TK), lambda qi, ki: (0, ki)),    # ||f1||^2 (f32, lane-dense)
                pl.BlockSpec((TQ, 8), lambda qi, ki: (qi, 0)),    # xyz q (pairs on sublanes)
                pl.BlockSpec((8, TK), lambda qi, ki: (0, ki)),    # xyz k (pairs on lanes)
            ],
            out_specs=pl.BlockSpec((TQ, 1), lambda qi, ki: (qi, 0)),
            scratch_shapes=[pltpu.VMEM((TQ, 1), jnp.float32)],    # running row-min
        ),
        compiler_params=pltpu.CompilerParams(
            dimension_semantics=("parallel", "arbitrary"),
            vmem_limit_bytes=48 * 1024 * 1024),
    )(f0p, f1p, f1p, sq0p, sq1p, xyzq, xyzk)

    # pos_loss.mean() + neg_loss == sum over valid pairs of (pos_i + neg_i) / P
    return jnp.sum(terms[:P, 0]) / P


def reference_loss(F0, F1, positive_pairs, xyz0, pos_thresh, neg_thresh, min_dist):
    """Pure-JAX mirror of the PyTorch forward (sanity check)."""
    posF0 = F0[positive_pairs[:, 0]]
    posF1 = F1[positive_pairs[:, 1]]
    subxyz0 = xyz0[positive_pairs[:, 0]]
    d2 = jnp.sum((subxyz0[:, None, :] - subxyz0[None, :, :]) ** 2, axis=-1)
    false_neg = jnp.sqrt(d2 + 1e-07) > min_dist
    furthest_pos = jnp.max((posF0 - posF1) ** 2, axis=1)
    dfeat = jnp.sum((posF0[:, None, :] - posF1[None, :, :]) ** 2, axis=-1)
    row_min = jnp.min(jnp.where(false_neg, dfeat, jnp.inf), axis=1)
    neg_loss = jnp.sum(jnp.maximum(neg_thresh - row_min, 0.0) ** 2) / posF0.shape[0]
    pos_loss = jnp.mean(jnp.maximum(furthest_pos - pos_thresh, 0.0) ** 2)
    return pos_loss + neg_loss


def _make_inputs(key, N0, N1, D, P):
    k_f0, k_f1, k_xyz, k_i0, k_i1 = jax.random.split(key, 5)
    F0 = 0.15 * jax.random.normal(k_f0, (N0, D), dtype=jnp.float32)
    F1 = 0.15 * jax.random.normal(k_f1, (N1, D), dtype=jnp.float32)
    xyz0 = jax.random.uniform(k_xyz, (N0, 3), dtype=jnp.float32)
    pairs = jnp.stack(
        [jax.random.randint(k_i0, (P,), 0, N0, dtype=jnp.int32),
         jax.random.randint(k_i1, (P,), 0, N1, dtype=jnp.int32)], axis=1)
    return F0, F1, pairs, xyz0


if __name__ == "__main__":
    # Deterministic "module init": contrastive-loss hyper-parameters.
    pos_thresh, neg_thresh, min_dist = 0.1, 1.4, 0.15
    key = jax.random.PRNGKey(0)
    k1, k2 = jax.random.split(key)

    def _check(loss, ref, tag):
        loss_f, ref_f = float(loss), float(ref)
        assert jnp.isfinite(loss), f"{tag}: non-finite loss"
        assert abs(loss_f - ref_f) <= 1e-2 * (1.0 + abs(ref_f)), (
            f"{tag}: mismatch kernel={loss_f} ref={ref_f}")

    # Case 1: tiny pair count -> single-tile grid (padding path).
    F0, F1, pairs, xyz0 = _make_inputs(k1, 64, 64, 32, 16)
    loss = jax.block_until_ready(
        batch_hard_contrastive_loss(F0, F1, pairs, xyz0,
                                    pos_thresh, neg_thresh, min_dist))
    _check(loss, reference_loss(F0, F1, pairs, xyz0,
                                pos_thresh, neg_thresh, min_dist), "small")

    # Case 2: P=300 -> padded to 384, two q tiles (megacore path) over one
    # k tile; exercises the running row-min scratch and the padded-column mask.
    F0, F1, pairs, xyz0 = _make_inputs(k2, 256, 256, 32, 300)
    loss = jax.block_until_ready(
        batch_hard_contrastive_loss(F0, F1, pairs, xyz0,
                                    pos_thresh, neg_thresh, min_dist))
    _check(loss, reference_loss(F0, F1, pairs, xyz0,
                                pos_thresh, neg_thresh, min_dist), "tiled")

    # TODO(synk): PyTorch raises on a row whose false_negative mask is all-False
    # (min of empty tensor); the kernel instead masks with +1e30 -> zero term.
    print("KERNEL_OK")
</pallas_src>

<mosaic_0001>
module attributes {stable_mosaic.version = 11 : i64} {
  func.func @_bh_kernel(%arg0: i32, %arg1: i32, %arg2: memref<128x128xbf16, #tpu.memory_space<vmem>>, %arg3: memref<128x128xbf16, #tpu.memory_space<vmem>>, %arg4: memref<128x128xbf16, #tpu.memory_space<vmem>>, %arg5: memref<128x1xf32, #tpu.memory_space<vmem>>, %arg6: memref<1x128xf32, #tpu.memory_space<vmem>>, %arg7: memref<128x8xf32, #tpu.memory_space<vmem>>, %arg8: memref<8x128xf32, #tpu.memory_space<vmem>>, %arg9: memref<128x1xf32, #tpu.memory_space<vmem>>, %arg10: memref<128x1xf32, #tpu.memory_space<vmem>>) attributes {dimension_semantics = [#tpu.dimension_semantics<parallel>, #tpu.dimension_semantics<arbitrary>], iteration_bounds = array<i64: 1, 1>, scalar_prefetch = 0 : i64, scratch_operands = 1 : i64, tpu.core_type = #tpu.core_type<tc>, window_params = [{transform_indices = @transform_0, window_bounds = array<i64: 128, 128>}, {transform_indices = @transform_1, window_bounds = array<i64: 128, 128>}, {transform_indices = @transform_2, window_bounds = array<i64: 128, 128>}, {transform_indices = @transform_3, window_bounds = array<i64: 128, 1>}, {transform_indices = @transform_4, window_bounds = array<i64: 1, 128>}, {transform_indices = @transform_5, window_bounds = array<i64: 128, 8>}, {transform_indices = @transform_6, window_bounds = array<i64: 8, 128>}, {transform_indices = @transform_7, window_bounds = array<i64: 128, 1>}]} {
    %c0_i32 = arith.constant 0 : i32
    %0 = arith.cmpi eq, %arg1, %c0_i32 : i32
    %1 = arith.extui %0 : i1 to i32
    %c0_i32_0 = arith.constant 0 : i32
    %2 = arith.cmpi ne, %1, %c0_i32_0 : i32
    scf.if %2 {
      %cst_23 = arith.constant 1.000000e+30 : f32
      %58 = vector.broadcast %cst_23 : f32 to vector<128x1xf32>
      %c0_24 = arith.constant 0 : index
      %c0_25 = arith.constant 0 : index
      %59 = vector.load %arg10[%c0_24, %c0_25] : memref<128x1xf32, #tpu.memory_space<vmem>>, vector<128x1xf32>
      tpu.vector_store %arg10[%c0_24, %c0_25], %58 {strides = array<i32>} : memref<128x1xf32, #tpu.memory_space<vmem>>, vector<128x1xf32>,
    } else {
    }
    %c0 = arith.constant 0 : index
    %c0_1 = arith.constant 0 : index
    %3 = vector.load %arg2[%c0, %c0_1] : memref<128x128xbf16, #tpu.memory_space<vmem>>, vector<128x128xbf16>
    %c0_2 = arith.constant 0 : index
    %c0_3 = arith.constant 0 : index
    %4 = vector.load %arg4[%c0_2, %c0_3] : memref<128x128xbf16, #tpu.memory_space<vmem>>, vector<128x128xbf16>
    %cst = arith.constant dense<0.000000e+00> : vector<128x128xf32>
    %5 = tpu.matmul %3, %4, %cst {dimension_numbers = #tpu.dot_dimension_numbers<[1], [1], [0], [0], [0, 0, 1, 0], [], []>} : vector<128x128xbf16>, vector<128x128xbf16>, vector<128x128xf32> -> vector<128x128xf32>
    %c0_4 = arith.constant 0 : index
    %c0_5 = arith.constant 0 : index
    %6 = vector.load %arg5[%c0_4, %c0_5] : memref<128x1xf32, #tpu.memory_space<vmem>>, vector<128x1xf32>
    %c0_6 = arith.constant 0 : index
    %c0_7 = arith.constant 0 : index
    %7 = vector.load %arg6[%c0_6, %c0_7] : memref<1x128xf32, #tpu.memory_space<vmem>>, vector<1x128xf32>
    %8 = vector.broadcast %6 : vector<128x1xf32> to vector<128x128xf32>
    %9 = vector.broadcast %7 : vector<1x128xf32> to vector<128x128xf32>
    %10 = arith.addf %8, %9 : vector<128x128xf32>
    %cst_8 = arith.constant 2.000000e+00 : f32
    %11 = vector.broadcast %cst_8 : f32 to vector<128x128xf32>
    %12 = arith.mulf %11, %5 : vector<128x128xf32>
    %13 = arith.subf %10, %12 : vector<128x128xf32>
    %cst_9 = arith.constant 0.000000e+00 : f32
    %14 = vector.broadcast %cst_9 : f32 to vector<128x128xf32>
    %15 = arith.maximumf %13, %14 : vector<128x128xf32>
    %c0_10 = arith.constant 0 : index
    %c0_11 = arith.constant 0 : index
    %16 = vector.load %arg7[%c0_10, %c0_11] : memref<128x8xf32, #tpu.memory_space<vmem>>, vector<128x8xf32>
    %c0_12 = arith.constant 0 : index
    %c0_13 = arith.constant 0 : index
    %17 = vector.load %arg8[%c0_12, %c0_13] : memref<8x128xf32, #tpu.memory_space<vmem>>, vector<8x128xf32>
    %18 = vector.extract_strided_slice %16 {offsets = [0, 0], sizes = [128, 1], strides = [1, 1]} : vector<128x8xf32> to vector<128x1xf32>
    %19 = vector.extract_strided_slice %17 {offsets = [0, 0], sizes = [1, 128], strides = [1, 1]} : vector<8x128xf32> to vector<1x128xf32>
    %20 = vector.broadcast %18 : vector<128x1xf32> to vector<128x128xf32>
    %21 = vector.broadcast %19 : vector<1x128xf32> to vector<128x128xf32>
    %22 = arith.subf %20, %21 : vector<128x128xf32>
    %23 = arith.mulf %22, %22 : vector<128x128xf32>
    %24 = vector.extract_strided_slice %16 {offsets = [0, 1], sizes = [128, 1], strides = [1, 1]} : vector<128x8xf32> to vector<128x1xf32>
    %25 = vector.extract_strided_slice %17 {offsets = [1, 0], sizes = [1, 128], strides = [1, 1]} : vector<8x128xf32> to vector<1x128xf32>
    %26 = vector.broadcast %24 : vector<128x1xf32> to vector<128x128xf32>
    %27 = vector.broadcast %25 : vector<1x128xf32> to vector<128x128xf32>
    %28 = arith.subf %26, %27 : vector<128x128xf32>
    %29 = arith.mulf %28, %28 : vector<128x128xf32>
    %30 = arith.addf %23, %29 : vector<128x128xf32>
    %31 = vector.extract_strided_slice %16 {offsets = [0, 2], sizes = [128, 1], strides = [1, 1]} : vector<128x8xf32> to vector<128x1xf32>
    %32 = vector.extract_strided_slice %17 {offsets = [2, 0], sizes = [1, 128], strides = [1, 1]} : vector<8x128xf32> to vector<1x128xf32>
    %33 = vector.broadcast %31 : vector<128x1xf32> to vector<128x128xf32>
    %34 = vector.broadcast %32 : vector<1x128xf32> to vector<128x128xf32>
    %35 = arith.subf %33, %34 : vector<128x128xf32>
    %36 = arith.mulf %35, %35 : vector<128x128xf32>
    %37 = arith.addf %30, %36 : vector<128x128xf32>
    %cst_14 = arith.constant 2.249990e-02 : f32
    %38 = vector.broadcast %cst_14 : f32 to vector<128x128xf32>
    %39 = arith.cmpf ogt, %37, %38 : vector<128x128xf32>
    %40 = tpu.iota {dimensions = array<i32: 1>} : vector<1x128xi32>
    %c128_i32 = arith.constant 128 : i32
    %41 = arith.muli %arg1, %c128_i32 : i32
    %42 = vector.broadcast %41 : i32 to vector<1x128xi32>
    %43 = arith.addi %40, %42 : vector<1x128xi32>
    %c16_i32 = arith.constant 16 : i32
    %44 = vector.broadcast %c16_i32 : i32 to vector<1x128xi32>
    %45 = arith.cmpi slt, %43, %44 : vector<1x128xi32>
    %46 = vector.broadcast %45 : vector<1x128xi1> to vector<128x128xi1>
    %47 = arith.andi %39, %46 : vector<128x128xi1>
    %c0_15 = arith.constant 0 : index
    %c0_16 = arith.constant 0 : index
    %48 = vector.load %arg10[%c0_15, %c0_16] : memref<128x1xf32, #tpu.memory_space<vmem>>, vector<128x1xf32>
    %cst_17 = arith.constant 1.000000e+30 : f32
    %49 = vector.broadcast %cst_17 : f32 to vector<128x128xf32>
    %50 = arith.select %47, %15, %49 : vector<128x128xi1>, vector<128x128xf32>
    %cst_18 = arith.constant dense<0x7F800000> : vector<128xf32>
    %51 = vector.multi_reduction <minimumf>, %50, %cst_18 [1] : vector<128x128xf32> to vector<128xf32>
    %52 = vector.shape_cast %51 : vector<128xf32> to vector<128x1xf32>
    %53 = arith.minimumf %48, %52 : vector<128x1xf32>
    %c0_19 = arith.constant 0 : index
    %c0_20 = arith.constant 0 : index
    %54 = vector.load %arg10[%c0_19, %c0_20] : memref<128x1xf32, #tpu.memory_space<vmem>>, vector<128x1xf32>
    tpu.vector_store %arg10[%c0_19, %c0_20], %53 {strides = array<i32>} : memref<128x1xf32, #tpu.memory_space<vmem>>, vector<128x1xf32>,
    %c0_i32_21 = arith.constant 0 : i32
    %55 = arith.cmpi eq, %arg1, %c0_i32_21 : i32
    %56 = arith.extui %55 : i1 to i32
    %c0_i32_22 = arith.constant 0 : i32
    %57 = arith.cmpi ne, %56, %c0_i32_22 : i32
    scf.if %57 {
      %c0_23 = arith.constant 0 : index
      %c0_24 = arith.constant 0 : index
      %58 = vector.load %arg2[%c0_23, %c0_24] : memref<128x128xbf16, #tpu.memory_space<vmem>>, vector<128x128xbf16>
      %59 = arith.extf %58 : vector<128x128xbf16> to vector<128x128xf32>
      %c0_25 = arith.constant 0 : index
      %c0_26 = arith.constant 0 : index
      %60 = vector.load %arg3[%c0_25, %c0_26] : memref<128x128xbf16, #tpu.memory_space<vmem>>, vector<128x128xbf16>
      %61 = arith.extf %60 : vector<128x128xbf16> to vector<128x128xf32>
      %62 = arith.subf %59, %61 : vector<128x128xf32>
      %63 = arith.mulf %62, %62 : vector<128x128xf32>
      %cst_27 = arith.constant dense<0xFF800000> : vector<128xf32>
      %64 = vector.multi_reduction <maximumf>, %63, %cst_27 [1] : vector<128x128xf32> to vector<128xf32>
      %65 = vector.shape_cast %64 : vector<128xf32> to vector<128x1xf32>
      %cst_28 = arith.constant 1.000000e-01 : f32
      %66 = vector.broadcast %cst_28 : f32 to vector<128x1xf32>
      %67 = arith.subf %65, %66 : vector<128x1xf32>
      %cst_29 = arith.constant 0.000000e+00 : f32
      %68 = vector.broadcast %cst_29 : f32 to vector<128x1xf32>
      %69 = arith.maximumf %67, %68 : vector<128x1xf32>
      %70 = arith.mulf %69, %69 : vector<128x1xf32>
      %c0_30 = arith.constant 0 : index
      %c0_31 = arith.constant 0 : index
      %71 = vector.load %arg10[%c0_30, %c0_31] : memref<128x1xf32, #tpu.memory_space<vmem>>, vector<128x1xf32>
      %cst_32 = arith.constant 1.400000e+00 : f32
      %72 = vector.broadcast %cst_32 : f32 to vector<128x1xf32>
      %73 = arith.subf %72, %71 : vector<128x1xf32>
      %cst_33 = arith.constant 0.000000e+00 : f32
      %74 = vector.broadcast %cst_33 : f32 to vector<128x1xf32>
      %75 = arith.maximumf %73, %74 : vector<128x1xf32>
      %76 = arith.mulf %75, %75 : vector<128x1xf32>
      %77 = arith.addf %70, %76 : vector<128x1xf32>
      %c0_34 = arith.constant 0 : index
      %c0_35 = arith.constant 0 : index
      %78 = vector.load %arg9[%c0_34, %c0_35] : memref<128x1xf32, #tpu.memory_space<vmem>>, vector<128x1xf32>
      tpu.vector_store %arg9[%c0_34, %c0_35], %77 {strides = array<i32>} : memref<128x1xf32, #tpu.memory_space<vmem>>, vector<128x1xf32>,
    } else {
    }
    return
  }
  func.func @transform_0(%arg0: i32, %arg1: i32) -> (i32, i32) {
    %c0_i32 = arith.constant 0 : i32
    %c0_i32_0 = arith.constant 0 : i32
    return %arg0, %c0_i32 : i32, i32
  }
  func.func @transform_1(%arg0: i32, %arg1: i32) -> (i32, i32) {
    %c0_i32 = arith.constant 0 : i32
    %c0_i32_0 = arith.constant 0 : i32
    return %arg0, %c0_i32 : i32, i32
  }
  func.func @transform_2(%arg0: i32, %arg1: i32) -> (i32, i32) {
    %c0_i32 = arith.constant 0 : i32
    %c0_i32_0 = arith.constant 0 : i32
    return %arg1, %c0_i32 : i32, i32
  }
  func.func @transform_3(%arg0: i32, %arg1: i32) -> (i32, i32) {
    %c0_i32 = arith.constant 0 : i32
    %c0_i32_0 = arith.constant 0 : i32
    return %arg0, %c0_i32 : i32, i32
  }
  func.func @transform_4(%arg0: i32, %arg1: i32) -> (i32, i32) {
    %c0_i32 = arith.constant 0 : i32
    %c0_i32_0 = arith.constant 0 : i32
    return %c0_i32, %arg1 : i32, i32
  }
  func.func @transform_5(%arg0: i32, %arg1: i32) -> (i32, i32) {
    %c0_i32 = arith.constant 0 : i32
    %c0_i32_0 = arith.constant 0 : i32
    return %arg0, %c0_i32 : i32, i32
  }
  func.func @transform_6(%arg0: i32, %arg1: i32) -> (i32, i32) {
    %c0_i32 = arith.constant 0 : i32
    %c0_i32_0 = arith.constant 0 : i32
    return %c0_i32, %arg1 : i32, i32
  }
  func.func @transform_7(%arg0: i32, %arg1: i32) -> (i32, i32) {
    %c0_i32 = arith.constant 0 : i32
    %c0_i32_0 = arith.constant 0 : i32
    return %arg0, %c0_i32 : i32, i32
  }
}

</mosaic_0001>

<llo_original>
// kernel: tpu_custom_call.1
$region0: #{tpu_custom_call.1}
  #allocation0 [shape = 'u32[]', space=smem, size = 0x4, offset = 0x4, fixed_abs, tag = 'smem constant byte address 0x4 - core index']
  #allocation1 [shape = 'u32[144,128]{1,0:T(1,128)}', space=vmem, size = 0x12000, scoped, tag = 'internal scratch']
  #allocation2 [shape = 'f32[128,1]{1,0:T(8,128)}', space=vmem, size = 0x10000, scoped, tag = 'scratch operand']
  %s0 = inlined_call_operand.vmem [shape: bf16[128,128], index: 0, kind: input, shape index: {}]
  %s1 = inlined_call_operand.vmem [shape: bf16[128,128], index: 1, kind: input, shape index: {}]
  %s2 = inlined_call_operand.vmem [shape: bf16[128,128], index: 2, kind: input, shape index: {}]
  %s3 = inlined_call_operand.vmem [shape: f32[128,1], index: 3, kind: input, shape index: {}]
  %s4 = inlined_call_operand.vmem [shape: f32[1,128], index: 4, kind: input, shape index: {}]
  %s5 = inlined_call_operand.vmem [shape: f32[128,8], index: 5, kind: input, shape index: {}]
  %s6 = inlined_call_operand.vmem [shape: f32[8,128], index: 6, kind: input, shape index: {}]
  %s7 = inlined_call_operand.vmem [shape: f32[128,1], index: 7, kind: output, shape index: {}]
  %s8 = sld [smem:[#allocation0]]
  $region46: #{tpu_custom_call.1} parent=0
    _
  %s10 = ssub.s32 1, %s8
  %s11 = scalar_select 0, %s10, %s8
  // Predicated region
  $region2: #{tpu_custom_call.1} parent=0 // pred_check
    _
  $region3: #{tpu_custom_call.1} parent=0 // pred_check_branch
    %13 = sbr.rel (0) target = $region5
  $region4: #{tpu_custom_call.1} parent=0 // pred_region
    _
  $region5: #{tpu_custom_call.1} parent=0 // pred_fallthru
    _
  // Predicated region
  $region6: #{tpu_custom_call.1} parent=0 // pred_check
    _
  $region7: #{tpu_custom_call.1} parent=0 // pred_check_branch
    %15 = sbr.rel (0) target = $region9
  $region8: #{tpu_custom_call.1} parent=0 // pred_region
    _
  $region9: #{tpu_custom_call.1} parent=0 // pred_fallthru
    _
  // Predicated region
  $region10: #{tpu_custom_call.1} parent=0 // pred_check
    _
  $region11: #{tpu_custom_call.1} parent=0 // pred_check_branch
    %17 = sbr.rel (0) target = $region13
  $region12: #{tpu_custom_call.1} parent=0 // pred_region
    _
  $region13: #{tpu_custom_call.1} parent=0 // pred_fallthru
    _
  // Predicated region
  $region14: #{tpu_custom_call.1} parent=0 // pred_check
    _
  $region15: #{tpu_custom_call.1} parent=0 // pred_check_branch
    %19 = sbr.rel (0) target = $region17
  $region16: #{tpu_custom_call.1} parent=0 // pred_region
    _
  $region17: #{tpu_custom_call.1} parent=0 // pred_fallthru
    _
  // Predicated region
  $region18: #{tpu_custom_call.1} parent=0 // pred_check
    _
  $region19: #{tpu_custom_call.1} parent=0 // pred_check_branch
    %21 = sbr.rel (0) target = $region21
  $region20: #{tpu_custom_call.1} parent=0 // pred_region
    _
  $region21: #{tpu_custom_call.1} parent=0 // pred_fallthru
    _
  // Predicated region
  $region22: #{tpu_custom_call.1} parent=0 // pred_check
    _
  $region23: #{tpu_custom_call.1} parent=0 // pred_check_branch
    %23 = sbr.rel (0) target = $region25
  $region24: #{tpu_custom_call.1} parent=0 // pred_region
    _
  $region25: #{tpu_custom_call.1} parent=0 // pred_fallthru
    _
  // Predicated region
  $region26: #{tpu_custom_call.1} parent=0 // pred_check
    _
  $region27: #{tpu_custom_call.1} parent=0 // pred_check_branch
    %25 = sbr.rel (0) target = $region29
  $region28: #{tpu_custom_call.1} parent=0 // pred_region
    _
  $region29: #{tpu_custom_call.1} parent=0 // pred_fallthru
    _
  %p27 = scmp.eq.s32.totalorder 0, 0
  // Predicated region
  $region30: #{tpu_custom_call.1} parent=0 // pred_check
    %p28 = pneg %p27
  $region31: #{tpu_custom_call.1} parent=0 // pred_check_branch
    %30 = sbr.rel (%p28) target = $region33
  $region32: #{tpu_custom_call.1} parent=0 // pred_region
    %vm31 = vcmask 7168
    %32 = vst.msk [vmem:[#allocation2] sm:$0xff] %vm31, 1e+30
    %33 = vst.msk [vmem:[#allocation2 + $0x8] sm:$0xff] %vm31, 1e+30
    %34 = vst.msk [vmem:[#allocation2 + $0x10] sm:$0xff] %vm31, 1e+30
    %35 = vst.msk [vmem:[#allocation2 + $0x18] sm:$0xff] %vm31, 1e+30
    %36 = vst.msk [vmem:[#allocation2 + $0x20] sm:$0xff] %vm31, 1e+30
    %37 = vst.msk [vmem:[#allocation2 + $0x28] sm:$0xff] %vm31, 1e+30
    %38 = vst.msk [vmem:[#allocation2 + $0x30] sm:$0xff] %vm31, 1e+30
    %39 = vst.msk [vmem:[#allocation2 + $0x38] sm:$0xff] %vm31, 1e+30
    %40 = vst.msk [vmem:[#allocation2 + $0x40] sm:$0xff] %vm31, 1e+30
    %41 = vst.msk [vmem:[#allocation2 + $0x48] sm:$0xff] %vm31, 1e+30
    %42 = vst.msk [vmem:[#allocation2 + $0x50] sm:$0xff] %vm31, 1e+30
    %43 = vst.msk [vmem:[#allocation2 + $0x58] sm:$0xff] %vm31, 1e+30
    %44 = vst.msk [vmem:[#allocation2 + $0x60] sm:$0xff] %vm31, 1e+30
    %45 = vst.msk [vmem:[#allocation2 + $0x68] sm:$0xff] %vm31, 1e+30
    %46 = vst.msk [vmem:[#allocation2 + $0x70] sm:$0xff] %vm31, 1e+30
    %47 = vst.msk [vmem:[#allocation2 + $0x78] sm:$0xff] %vm31, 1e+30
  $region33: #{tpu_custom_call.1} parent=0 // pred_fallthru
    _
  %v48 = vld [vmem:[%s0] sm:$0xf]
  %v49 = vld [vmem:[%s0 + $0x4] sm:$0xf]
  %v50 = vld [vmem:[%s0 + $0x8] sm:$0xf]
  %v51 = vld [vmem:[%s0 + $0xc] sm:$0xf]
  %v52 = vld [vmem:[%s0 + $0x10] sm:$0xf]
  %v53 = vld [vmem:[%s0 + $0x14] sm:$0xf]
  %v54 = vld [vmem:[%s0 + $0x18] sm:$0xf]
  %v55 = vld [vmem:[%s0 + $0x1c] sm:$0xf]
  %v56 = vld [vmem:[%s0 + $0x20] sm:$0xf]
  %v57 = vld [vmem:[%s0 + $0x24] sm:$0xf]
  %v58 = vld [vmem:[%s0 + $0x28] sm:$0xf]
  %v59 = vld [vmem:[%s0 + $0x2c] sm:$0xf]
  %v60 = vld [vmem:[%s0 + $0x30] sm:$0xf]
  %v61 = vld [vmem:[%s0 + $0x34] sm:$0xf]
  %v62 = vld [vmem:[%s0 + $0x38] sm:$0xf]
  %v63 = vld [vmem:[%s0 + $0x3c] sm:$0xf]
  %v64 = vld [vmem:[%s2] sm:$0xf]
  %v65 = vld [vmem:[%s2 + $0x4] sm:$0xf]
  %v66 = vld [vmem:[%s2 + $0x8] sm:$0xf]
  %v67 = vld [vmem:[%s2 + $0xc] sm:$0xf]
  %v68 = vld [vmem:[%s2 + $0x10] sm:$0xf]
  %v69 = vld [vmem:[%s2 + $0x14] sm:$0xf]
  %v70 = vld [vmem:[%s2 + $0x18] sm:$0xf]
  %v71 = vld [vmem:[%s2 + $0x1c] sm:$0xf]
  %v72 = vld [vmem:[%s2 + $0x20] sm:$0xf]
  %v73 = vld [vmem:[%s2 + $0x24] sm:$0xf]
  %v74 = vld [vmem:[%s2 + $0x28] sm:$0xf]
  %v75 = vld [vmem:[%s2 + $0x2c] sm:$0xf]
  %v76 = vld [vmem:[%s2 + $0x30] sm:$0xf]
  %v77 = vld [vmem:[%s2 + $0x34] sm:$0xf]
  %v78 = vld [vmem:[%s2 + $0x38] sm:$0xf]
  %v79 = vld [vmem:[%s2 + $0x3c] sm:$0xf]
  %v96 = vunpack.c.l.b16 %v48
  %v97 = vunpack.c.l.b16 %v49
  %v98 = vunpack.c.l.b16 %v50
  %v99 = vunpack.c.l.b16 %v51
  %v100 = vunpack.c.l.b16 %v52
  %v101 = vunpack.c.l.b16 %v53
  %v102 = vunpack.c.l.b16 %v54
  %v103 = vunpack.c.l.b16 %v55
  %v104 = vunpack.c.l.b16 %v56
  %v105 = vunpack.c.l.b16 %v57
  %v106 = vunpack.c.l.b16 %v58
  %v107 = vunpack.c.l.b16 %v59
  %v108 = vunpack.c.l.b16 %v60
  %v109 = vunpack.c.l.b16 %v61
  %v110 = vunpack.c.l.b16 %v62
  %v111 = vunpack.c.l.b16 %v63
  %v112 = vpack.c.b16 %v97, %v96
  %v113 = vpack.c.b16 %v99, %v98
  %v114 = vpack.c.b16 %v101, %v100
  %v115 = vpack.c.b16 %v103, %v102
  %v116 = vpack.c.b16 %v105, %v104
  %v117 = vpack.c.b16 %v107, %v106
  %v118 = vpack.c.b16 %v109, %v108
  %v119 = vpack.c.b16 %v111, %v110
  %v144 = vunpack.c.l.b16 %v64
  %v145 = vunpack.c.l.b16 %v65
  %v146 = vunpack.c.l.b16 %v66
  %v147 = vunpack.c.l.b16 %v67
  %v148 = vunpack.c.l.b16 %v68
  %v149 = vunpack.c.l.b16 %v69
  %v150 = vunpack.c.l.b16 %v70
  %v151 = vunpack.c.l.b16 %v71
  %v152 = vunpack.c.l.b16 %v72
  %v153 = vunpack.c.l.b16 %v73
  %v154 = vunpack.c.l.b16 %v74
  %v155 = vunpack.c.l.b16 %v75
  %v156 = vunpack.c.l.b16 %v76
  %v157 = vunpack.c.l.b16 %v77
  %v158 = vunpack.c.l.b16 %v78
  %v159 = vunpack.c.l.b16 %v79
  %v160 = vpack.c.b16 %v145, %v144
  %v161 = vpack.c.b16 %v147, %v146
  %v162 = vpack.c.b16 %v149, %v148
  %v163 = vpack.c.b16 %v151, %v150
  %v164 = vpack.c.b16 %v153, %v152
  %v165 = vpack.c.b16 %v155, %v154
  %v166 = vpack.c.b16 %v157, %v156
  %v167 = vpack.c.b16 %v159, %v158
  %176 = vmatprep.subr.bf16.mxu0 0
  %177 = vmatpush1.bf16.xpose.msra.mxu0 %v167
  %178 = vmatprep.subr.bf16.mxu0 0
  %179 = vmatpush1.bf16.xpose.msra.mxu0 %v166
  %180 = vmatprep.subr.bf16.mxu0 0
  %181 = vmatpush1.bf16.xpose.msra.mxu0 %v165
  %182 = vmatprep.subr.bf16.mxu0 0
  %183 = vmatpush1.bf16.xpose.msra.mxu0 %v164
  %184 = vmatprep.subr.bf16.mxu0 0
  %185 = vmatpush1.bf16.xpose.msra.mxu0 %v163
  %186 = vmatprep.subr.bf16.mxu0 0
  %187 = vmatpush1.bf16.xpose.msra.mxu0 %v162
  %188 = vmatprep.subr.bf16.mxu0 0
  %189 = vmatpush1.bf16.xpose.msra.mxu0 %v161
  %190 = vmatprep.subr.bf16.mxu0 0
  %191 = vmatpush1.bf16.xpose.msra.mxu0 %v160
  %192 = vmatprep.subr.bf16.mxu0 0
  %193 = vmatpush2.bf16.xpose.msra.mxu0 0
  %194 = vmatprep.subr.bf16.mxu0 0
  %195 = vmatpush2.bf16.xpose.msra.mxu0 0
  %196 = vmatprep.subr.bf16.mxu0 0
  %197 = vmatpush2.bf16.xpose.msra.mxu0 0
  %198 = vmatprep.subr.bf16.mxu0 0
  %199 = vmatpush2.bf16.xpose.msra.mxu0 0
  %200 = vmatprep.subr.bf16.mxu0 0
  %201 = vmatpush2.bf16.xpose.msra.mxu0 0
  %202 = vmatprep.subr.bf16.mxu0 0
  %203 = vmatpush2.bf16.xpose.msra.mxu0 0
  %204 = vmatprep.subr.bf16.mxu0 0
  %205 = vmatpush2.bf16.xpose.msra.mxu0 0
  %206 = vmatprep.subr.bf16.mxu0 0
  %207 = vmatpush2.bf16.xpose.msra.mxu0 0
  %208 = vmatprep.mubr.bf16.mxu0 0
  %209 = vmatmul.mubr.bf16.gmra.mxu0 %v112
  %v210 = vpop.f32.mrf.mxu0
  %v211 = vadd.f32 0.0, %v210
  %v212 = vpop.f32.mrf.mxu0
  %v213 = vpop.f32.mrf.mxu0
  %v214 = vadd.f32 0.0, %v213
  %v215 = vpop.f32.mrf.mxu0
  %216 = vmatprep.mubr.bf16.mxu0 0
  %217 = vmatmul.mubr.bf16.gmra.mxu0 %v113
  %v218 = vpop.f32.mrf.mxu0
  %v219 = vadd.f32 0.0, %v218
  %v220 = vpop.f32.mrf.mxu0
  %v221 = vpop.f32.mrf.mxu0
  %v222 = vadd.f32 0.0, %v221
  %v223 = vpop.f32.mrf.mxu0
  %224 = vmatprep.mubr.bf16.mxu0 0
  %225 = vmatmul.mubr.bf16.gmra.mxu0 %v114
  %v226 = vpop.f32.mrf.mxu0
  %v227 = vadd.f32 0.0, %v226
  %v228 = vpop.f32.mrf.mxu0
  %v229 = vpop.f32.mrf.mxu0
  %v230 = vadd.f32 0.0, %v229
  %v231 = vpop.f32.mrf.mxu0
  %232 = vmatprep.mubr.bf16.mxu0 0
  %233 = vmatmul.mubr.bf16.gmra.mxu0 %v115
  %v234 = vpop.f32.mrf.mxu0
  %v235 = vadd.f32 0.0, %v234
  %v236 = vpop.f32.mrf.mxu0
  %v237 = vpop.f32.mrf.mxu0
  %v238 = vadd.f32 0.0, %v237
  %v239 = vpop.f32.mrf.mxu0
  %240 = vmatprep.mubr.bf16.mxu0 0
  %241 = vmatmul.mubr.bf16.gmra.mxu0 %v116
  %v242 = vpop.f32.mrf.mxu0
  %v243 = vadd.f32 0.0, %v242
  %v244 = vpop.f32.mrf.mxu0
  %v245 = vpop.f32.mrf.mxu0
  %v246 = vadd.f32 0.0, %v245
  %v247 = vpop.f32.mrf.mxu0
  %248 = vmatprep.mubr.bf16.mxu0 0
  %249 = vmatmul.mubr.bf16.gmra.mxu0 %v117
  %v250 = vpop.f32.mrf.mxu0
  %v251 = vadd.f32 0.0, %v250
  %v252 = vpop.f32.mrf.mxu0
  %v253 = vpop.f32.mrf.mxu0
  %v254 = vadd.f32 0.0, %v253
  %v255 = vpop.f32.mrf.mxu0
  %256 = vmatprep.mubr.bf16.mxu0 0
  %257 = vmatmul.mubr.bf16.gmra.mxu0 %v118
  %v258 = vpop.f32.mrf.mxu0
  %v259 = vadd.f32 0.0, %v258
  %v260 = vpop.f32.mrf.mxu0
  %v261 = vpop.f32.mrf.mxu0
  %v262 = vadd.f32 0.0, %v261
  %v263 = vpop.f32.mrf.mxu0
  %264 = vmatprep.mubr.bf16.mxu0 0
  %265 = vmatmul.mubr.bf16.gmra.mxu0 %v119
  %v266 = vpop.f32.mrf.mxu0
  %v267 = vadd.f32 0.0, %v266
  %v268 = vpop.f32.mrf.mxu0
  %v269 = vpop.f32.mrf.mxu0
  %v270 = vadd.f32 0.0, %v269
  %v271 = vpop.f32.mrf.mxu0
  %272 = vdwg.mxu0
  %v273 = vld [vmem:[%s3] sm:$0xff]
  %v274 = vld [vmem:[%s3 + $0x8] sm:$0xff]
  %v275 = vld [vmem:[%s3 + $0x10] sm:$0xff]
  %v276 = vld [vmem:[%s3 + $0x18] sm:$0xff]
  %v277 = vld [vmem:[%s3 + $0x20] sm:$0xff]
  %v278 = vld [vmem:[%s3 + $0x28] sm:$0xff]
  %v279 = vld [vmem:[%s3 + $0x30] sm:$0xff]
  %v280 = vld [vmem:[%s3 + $0x38] sm:$0xff]
  %v281 = vld [vmem:[%s3 + $0x40] sm:$0xff]
  %v282 = vld [vmem:[%s3 + $0x48] sm:$0xff]
  %v283 = vld [vmem:[%s3 + $0x50] sm:$0xff]
  %v284 = vld [vmem:[%s3 + $0x58] sm:$0xff]
  %v285 = vld [vmem:[%s3 + $0x60] sm:$0xff]
  %v286 = vld [vmem:[%s3 + $0x68] sm:$0xff]
  %v287 = vld [vmem:[%s3 + $0x70] sm:$0xff]
  %v288 = vld [vmem:[%s3 + $0x78] sm:$0xff]
  %v289 = vld [vmem:[%s4] sm:$0x1]
  %291 = vset.pattern.permute.xlu0 0
  %292 = vperm.xlu0 %291, %v273
  %v293 = vpop.permute.xlu0 %292
  %296 = vset.pattern.permute.xlu0 0
  %297 = vperm.xlu0 %296, %v274
  %v298 = vpop.permute.xlu0 %297
  %301 = vset.pattern.permute.xlu0 0
  %302 = vperm.xlu0 %301, %v275
  %v303 = vpop.permute.xlu0 %302
  %306 = vset.pattern.permute.xlu0 0
  %307 = vperm.xlu0 %306, %v276
  %v308 = vpop.permute.xlu0 %307
  %311 = vset.pattern.permute.xlu0 0
  %312 = vperm.xlu0 %311, %v277
  %v313 = vpop.permute.xlu0 %312
  %316 = vset.pattern.permute.xlu0 0
  %317 = vperm.xlu0 %316, %v278
  %v318 = vpop.permute.xlu0 %317
  %321 = vset.pattern.permute.xlu0 0
  %322 = vperm.xlu0 %321, %v279
  %v323 = vpop.permute.xlu0 %322
  %326 = vset.pattern.permute.xlu0 0
  %327 = vperm.xlu0 %326, %v280
  %v328 = vpop.permute.xlu0 %327
  %331 = vset.pattern.permute.xlu0 0
  %332 = vperm.xlu0 %331, %v281
  %v333 = vpop.permute.xlu0 %332
  %336 = vset.pattern.permute.xlu0 0
  %337 = vperm.xlu0 %336, %v282
  %v338 = vpop.permute.xlu0 %337
  %341 = vset.pattern.permute.xlu0 0
  %342 = vperm.xlu0 %341, %v283
  %v343 = vpop.permute.xlu0 %342
  %346 = vset.pattern.permute.xlu0 0
  %347 = vperm.xlu0 %346, %v284
  %v348 = vpop.permute.xlu0 %347
  %351 = vset.pattern.permute.xlu0 0
  %352 = vperm.xlu0 %351, %v285
  %v353 = vpop.permute.xlu0 %352
  %356 = vset.pattern.permute.xlu0 0
  %357 = vperm.xlu0 %356, %v286
  %v358 = vpop.permute.xlu0 %357
  %361 = vset.pattern.permute.xlu0 0
  %362 = vperm.xlu0 %361, %v287
  %v363 = vpop.permute.xlu0 %362
  %366 = vset.pattern.permute.xlu0 0
  %367 = vperm.xlu0 %366, %v288
  %v368 = vpop.permute.xlu0 %367
  %v371 = vlaneseq
  %v372 = vshrl.u32 %v371, 7
  %v373 = vsub.s32 0, %v372
  %v374 = vrot.slane %v289, %v373
  %v376 = vadd.f32 %v293, %v374
  %v377 = vadd.f32 %v298, %v374
  %v378 = vadd.f32 %v303, %v374
  %v379 = vadd.f32 %v308, %v374
  %v380 = vadd.f32 %v313, %v374
  %v381 = vadd.f32 %v318, %v374
  %v382 = vadd.f32 %v323, %v374
  %v383 = vadd.f32 %v328, %v374
  %v384 = vadd.f32 %v333, %v374
  %v385 = vadd.f32 %v338, %v374
  %v386 = vadd.f32 %v343, %v374
  %v387 = vadd.f32 %v348, %v374
  %v388 = vadd.f32 %v353, %v374
  %v389 = vadd.f32 %v358, %v374
  %v390 = vadd.f32 %v363, %v374
  %v391 = vadd.f32 %v368, %v374
  %v392 = vmul.f32 %v211, 2.0
  %v393 = vmul.f32 %v214, 2.0
  %v394 = vmul.f32 %v219, 2.0
  %v395 = vmul.f32 %v222, 2.0
  %v396 = vmul.f32 %v227, 2.0
  %v397 = vmul.f32 %v230, 2.0
  %v398 = vmul.f32 %v235, 2.0
  %v399 = vmul.f32 %v238, 2.0
  %v400 = vmul.f32 %v243, 2.0
  %v401 = vmul.f32 %v246, 2.0
  %v402 = vmul.f32 %v251, 2.0
  %v403 = vmul.f32 %v254, 2.0
  %v404 = vmul.f32 %v259, 2.0
  %v405 = vmul.f32 %v262, 2.0
  %v406 = vmul.f32 %v267, 2.0
  %v407 = vmul.f32 %v270, 2.0
  %v408 = vsub.f32 %v376, %v392
  %v409 = vsub.f32 %v377, %v393
  %v410 = vsub.f32 %v378, %v394
  %v411 = vsub.f32 %v379, %v395
  %v412 = vsub.f32 %v380, %v396
  %v413 = vsub.f32 %v381, %v397
  %v414 = vsub.f32 %v382, %v398
  %v415 = vsub.f32 %v383, %v399
  %v416 = vsub.f32 %v384, %v400
  %v417 = vsub.f32 %v385, %v401
  %v418 = vsub.f32 %v386, %v402
  %v419 = vsub.f32 %v387, %v403
  %v420 = vsub.f32 %v388, %v404
  %v421 = vsub.f32 %v389, %v405
  %v422 = vsub.f32 %v390, %v406
  %v423 = vsub.f32 %v391, %v407
  %v424 = vmax.f32 %v408, 0.0
  %v425 = vmax.f32 %v409, 0.0
  %v426 = vmax.f32 %v410, 0.0
  %v427 = vmax.f32 %v411, 0.0
  %v428 = vmax.f32 %v412, 0.0
  %v429 = vmax.f32 %v413, 0.0
  %v430 = vmax.f32 %v414, 0.0
  %v431 = vmax.f32 %v415, 0.0
  %v432 = vmax.f32 %v416, 0.0
  %v433 = vmax.f32 %v417, 0.0
  %v434 = vmax.f32 %v418, 0.0
  %v435 = vmax.f32 %v419, 0.0
  %v436 = vmax.f32 %v420, 0.0
  %v437 = vmax.f32 %v421, 0.0
  %v438 = vmax.f32 %v422, 0.0
  %v439 = vmax.f32 %v423, 0.0
  %v440 = vld [vmem:[%s5] sm:$0xff]
  %v441 = vld [vmem:[%s5 + $0x8] sm:$0xff]
  %v442 = vld [vmem:[%s5 + $0x10] sm:$0xff]
  %v443 = vld [vmem:[%s5 + $0x18] sm:$0xff]
  %v444 = vld [vmem:[%s5 + $0x20] sm:$0xff]
  %v445 = vld [vmem:[%s5 + $0x28] sm:$0xff]
  %v446 = vld [vmem:[%s5 + $0x30] sm:$0xff]
  %v447 = vld [vmem:[%s5 + $0x38] sm:$0xff]
  %v448 = vld [vmem:[%s5 + $0x40] sm:$0xff]
  %v449 = vld [vmem:[%s5 + $0x48] sm:$0xff]
  %v450 = vld [vmem:[%s5 + $0x50] sm:$0xff]
  %v451 = vld [vmem:[%s5 + $0x58] sm:$0xff]
  %v452 = vld [vmem:[%s5 + $0x60] sm:$0xff]
  %v453 = vld [vmem:[%s5 + $0x68] sm:$0xff]
  %v454 = vld [vmem:[%s5 + $0x70] sm:$0xff]
  %v455 = vld [vmem:[%s5 + $0x78] sm:$0xff]
  %v456 = vld [vmem:[%s6] sm:$0xff]
  %458 = vset.pattern.permute.xlu0 0
  %459 = vperm.xlu0 %458, %v440
  %v460 = vpop.permute.xlu0 %459
  %463 = vset.pattern.permute.xlu0 0
  %464 = vperm.xlu0 %463, %v441
  %v465 = vpop.permute.xlu0 %464
  %468 = vset.pattern.permute.xlu0 0
  %469 = vperm.xlu0 %468, %v442
  %v470 = vpop.permute.xlu0 %469
  %473 = vset.pattern.permute.xlu0 0
  %474 = vperm.xlu0 %473, %v443
  %v475 = vpop.permute.xlu0 %474
  %478 = vset.pattern.permute.xlu0 0
  %479 = vperm.xlu0 %478, %v444
  %v480 = vpop.permute.xlu0 %479
  %483 = vset.pattern.permute.xlu0 0
  %484 = vperm.xlu0 %483, %v445
  %v485 = vpop.permute.xlu0 %484
  %488 = vset.pattern.permute.xlu0 0
  %489 = vperm.xlu0 %488, %v446
  %v490 = vpop.permute.xlu0 %489
  %493 = vset.pattern.permute.xlu0 0
  %494 = vperm.xlu0 %493, %v447
  %v495 = vpop.permute.xlu0 %494
  %498 = vset.pattern.permute.xlu0 0
  %499 = vperm.xlu0 %498, %v448
  %v500 = vpop.permute.xlu0 %499
  %503 = vset.pattern.permute.xlu0 0
  %504 = vperm.xlu0 %503, %v449
  %v505 = vpop.permute.xlu0 %504
  %508 = vset.pattern.permute.xlu0 0
  %509 = vperm.xlu0 %508, %v450
  %v510 = vpop.permute.xlu0 %509
  %513 = vset.pattern.permute.xlu0 0
  %514 = vperm.xlu0 %513, %v451
  %v515 = vpop.permute.xlu0 %514
  %518 = vset.pattern.permute.xlu0 0
  %519 = vperm.xlu0 %518, %v452
  %v520 = vpop.permute.xlu0 %519
  %523 = vset.pattern.permute.xlu0 0
  %524 = vperm.xlu0 %523, %v453
  %v525 = vpop.permute.xlu0 %524
  %528 = vset.pattern.permute.xlu0 0
  %529 = vperm.xlu0 %528, %v454
  %v530 = vpop.permute.xlu0 %529
  %533 = vset.pattern.permute.xlu0 0
  %534 = vperm.xlu0 %533, %v455
  %v535 = vpop.permute.xlu0 %534
  %v537 = vlaneseq
  %v538 = vshrl.u32 %v537, 7
  %v539 = vsub.s32 0, %v538
  %v540 = vrot.slane %v456, %v539
  %v541 = vsub.f32 %v460, %v540
  %v542 = vsub.f32 %v465, %v540
  %v543 = vsub.f32 %v470, %v540
  %v544 = vsub.f32 %v475, %v540
  %v545 = vsub.f32 %v480, %v540
  %v546 = vsub.f32 %v485, %v540
  %v547 = vsub.f32 %v490, %v540
  %v548 = vsub.f32 %v495, %v540
  %v549 = vsub.f32 %v500, %v540
  %v550 = vsub.f32 %v505, %v540
  %v551 = vsub.f32 %v510, %v540
  %v552 = vsub.f32 %v515, %v540
  %v553 = vsub.f32 %v520, %v540
  %v554 = vsub.f32 %v525, %v540
  %v555 = vsub.f32 %v530, %v540
  %v556 = vsub.f32 %v535, %v540
  %v557 = vmul.f32 %v541, %v541
  %v558 = vmul.f32 %v542, %v542
  %v559 = vmul.f32 %v543, %v543
  %v560 = vmul.f32 %v544, %v544
  %v561 = vmul.f32 %v545, %v545
  %v562 = vmul.f32 %v546, %v546
  %v563 = vmul.f32 %v547, %v547
  %v564 = vmul.f32 %v548, %v548
  %v565 = vmul.f32 %v549, %v549
  %v566 = vmul.f32 %v550, %v550
  %v567 = vmul.f32 %v551, %v551
  %v568 = vmul.f32 %v552, %v552
  %v569 = vmul.f32 %v553, %v553
  %v570 = vmul.f32 %v554, %v554
  %v571 = vmul.f32 %v555, %v555
  %v572 = vmul.f32 %v556, %v556
  %573 = vset.pattern.permute.xlu0 1
  %574 = vperm.xlu0 %573, %v440
  %v575 = vpop.permute.xlu0 %574
  %577 = vset.pattern.permute.xlu0 1
  %578 = vperm.xlu0 %577, %v441
  %v579 = vpop.permute.xlu0 %578
  %581 = vset.pattern.permute.xlu0 1
  %582 = vperm.xlu0 %581, %v442
  %v583 = vpop.permute.xlu0 %582
  %585 = vset.pattern.permute.xlu0 1
  %586 = vperm.xlu0 %585, %v443
  %v587 = vpop.permute.xlu0 %586
  %589 = vset.pattern.permute.xlu0 1
  %590 = vperm.xlu0 %589, %v444
  %v591 = vpop.permute.xlu0 %590
  %593 = vset.pattern.permute.xlu0 1
  %594 = vperm.xlu0 %593, %v445
  %v595 = vpop.permute.xlu0 %594
  %597 = vset.pattern.permute.xlu0 1
  %598 = vperm.xlu0 %597, %v446
  %v599 = vpop.permute.xlu0 %598
  %601 = vset.pattern.permute.xlu0 1
  %602 = vperm.xlu0 %601, %v447
  %v603 = vpop.permute.xlu0 %602
  %605 = vset.pattern.permute.xlu0 1
  %606 = vperm.xlu0 %605, %v448
  %v607 = vpop.permute.xlu0 %606
  %609 = vset.pattern.permute.xlu0 1
  %610 = vperm.xlu0 %609, %v449
  %v611 = vpop.permute.xlu0 %610
  %613 = vset.pattern.permute.xlu0 1
  %614 = vperm.xlu0 %613, %v450
  %v615 = vpop.permute.xlu0 %614
  %617 = vset.pattern.permute.xlu0 1
  %618 = vperm.xlu0 %617, %v451
  %v619 = vpop.permute.xlu0 %618
  %621 = vset.pattern.permute.xlu0 1
  %622 = vperm.xlu0 %621, %v452
  %v623 = vpop.permute.xlu0 %622
  %625 = vset.pattern.permute.xlu0 1
  %626 = vperm.xlu0 %625, %v453
  %v627 = vpop.permute.xlu0 %626
  %629 = vset.pattern.permute.xlu0 1
  %630 = vperm.xlu0 %629, %v454
  %v631 = vpop.permute.xlu0 %630
  %633 = vset.pattern.permute.xlu0 1
  %634 = vperm.xlu0 %633, %v455
  %v635 = vpop.permute.xlu0 %634
  %v637 = vlaneseq
  %v638 = vshrl.u32 %v637, 7
  %v639 = vsub.s32 1, %v638
  %v640 = vrot.slane %v456, %v639
  %v641 = vsub.f32 %v575, %v640
  %v642 = vsub.f32 %v579, %v640
  %v643 = vsub.f32 %v583, %v640
  %v644 = vsub.f32 %v587, %v640
  %v645 = vsub.f32 %v591, %v640
  %v646 = vsub.f32 %v595, %v640
  %v647 = vsub.f32 %v599, %v640
  %v648 = vsub.f32 %v603, %v640
  %v649 = vsub.f32 %v607, %v640
  %v650 = vsub.f32 %v611, %v640
  %v651 = vsub.f32 %v615, %v640
  %v652 = vsub.f32 %v619, %v640
  %v653 = vsub.f32 %v623, %v640
  %v654 = vsub.f32 %v627, %v640
  %v655 = vsub.f32 %v631, %v640
  %v656 = vsub.f32 %v635, %v640
  %v657 = vmul.f32 %v641, %v641
  %v658 = vmul.f32 %v642, %v642
  %v659 = vmul.f32 %v643, %v643
  %v660 = vmul.f32 %v644, %v644
  %v661 = vmul.f32 %v645, %v645
  %v662 = vmul.f32 %v646, %v646
  %v663 = vmul.f32 %v647, %v647
  %v664 = vmul.f32 %v648, %v648
  %v665 = vmul.f32 %v649, %v649
  %v666 = vmul.f32 %v650, %v650
  %v667 = vmul.f32 %v651, %v651
  %v668 = vmul.f32 %v652, %v652
  %v669 = vmul.f32 %v653, %v653
  %v670 = vmul.f32 %v654, %v654
  %v671 = vmul.f32 %v655, %v655
  %v672 = vmul.f32 %v656, %v656
  %v673 = vadd.f32 %v557, %v657
  %v674 = vadd.f32 %v558, %v658
  %v675 = vadd.f32 %v559, %v659
  %v676 = vadd.f32 %v560, %v660
  %v677 = vadd.f32 %v561, %v661
  %v678 = vadd.f32 %v562, %v662
  %v679 = vadd.f32 %v563, %v663
  %v680 = vadd.f32 %v564, %v664
  %v681 = vadd.f32 %v565, %v665
  %v682 = vadd.f32 %v566, %v666
  %v683 = vadd.f32 %v567, %v667
  %v684 = vadd.f32 %v568, %v668
  %v685 = vadd.f32 %v569, %v669
  %v686 = vadd.f32 %v570, %v670
  %v687 = vadd.f32 %v571, %v671
  %v688 = vadd.f32 %v572, %v672
  %689 = vset.pattern.permute.xlu0 2
  %690 = vperm.xlu0 %689, %v440
  %v691 = vpop.permute.xlu0 %690
  %693 = vset.pattern.permute.xlu0 2
  %694 = vperm.xlu0 %693, %v441
  %v695 = vpop.permute.xlu0 %694
  %697 = vset.pattern.permute.xlu0 2
  %698 = vperm.xlu0 %697, %v442
  %v699 = vpop.permute.xlu0 %698
  %701 = vset.pattern.permute.xlu0 2
  %702 = vperm.xlu0 %701, %v443
  %v703 = vpop.permute.xlu0 %702
  %705 = vset.pattern.permute.xlu0 2
  %706 = vperm.xlu0 %705, %v444
  %v707 = vpop.permute.xlu0 %706
  %709 = vset.pattern.permute.xlu0 2
  %710 = vperm.xlu0 %709, %v445
  %v711 = vpop.permute.xlu0 %710
  %713 = vset.pattern.permute.xlu0 2
  %714 = vperm.xlu0 %713, %v446
  %v715 = vpop.permute.xlu0 %714
  %717 = vset.pattern.permute.xlu0 2
  %718 = vperm.xlu0 %717, %v447
  %v719 = vpop.permute.xlu0 %718
  %721 = vset.pattern.permute.xlu0 2
  %722 = vperm.xlu0 %721, %v448
  %v723 = vpop.permute.xlu0 %722
  %725 = vset.pattern.permute.xlu0 2
  %726 = vperm.xlu0 %725, %v449
  %v727 = vpop.permute.xlu0 %726
  %729 = vset.pattern.permute.xlu0 2
  %730 = vperm.xlu0 %729, %v450
  %v731 = vpop.permute.xlu0 %730
  %733 = vset.pattern.permute.xlu0 2
  %734 = vperm.xlu0 %733, %v451
  %v735 = vpop.permute.xlu0 %734
  %737 = vset.pattern.permute.xlu0 2
  %738 = vperm.xlu0 %737, %v452
  %v739 = vpop.permute.xlu0 %738
  %741 = vset.pattern.permute.xlu0 2
  %742 = vperm.xlu0 %741, %v453
  %v743 = vpop.permute.xlu0 %742
  %745 = vset.pattern.permute.xlu0 2
  %746 = vperm.xlu0 %745, %v454
  %v747 = vpop.permute.xlu0 %746
  %749 = vset.pattern.permute.xlu0 2
  %750 = vperm.xlu0 %749, %v455
  %v751 = vpop.permute.xlu0 %750
  %v753 = vlaneseq
  %v754 = vshrl.u32 %v753, 7
  %v755 = vsub.s32 2, %v754
  %v756 = vrot.slane %v456, %v755
  %v757 = vsub.f32 %v691, %v756
  %v758 = vsub.f32 %v695, %v756
  %v759 = vsub.f32 %v699, %v756
  %v760 = vsub.f32 %v703, %v756
  %v761 = vsub.f32 %v707, %v756
  %v762 = vsub.f32 %v711, %v756
  %v763 = vsub.f32 %v715, %v756
  %v764 = vsub.f32 %v719, %v756
  %v765 = vsub.f32 %v723, %v756
  %v766 = vsub.f32 %v727, %v756
  %v767 = vsub.f32 %v731, %v756
  %v768 = vsub.f32 %v735, %v756
  %v769 = vsub.f32 %v739, %v756
  %v770 = vsub.f32 %v743, %v756
  %v771 = vsub.f32 %v747, %v756
  %v772 = vsub.f32 %v751, %v756
  %v773 = vmul.f32 %v757, %v757
  %v774 = vmul.f32 %v758, %v758
  %v775 = vmul.f32 %v759, %v759
  %v776 = vmul.f32 %v760, %v760
  %v777 = vmul.f32 %v761, %v761
  %v778 = vmul.f32 %v762, %v762
  %v779 = vmul.f32 %v763, %v763
  %v780 = vmul.f32 %v764, %v764
  %v781 = vmul.f32 %v765, %v765
  %v782 = vmul.f32 %v766, %v766
  %v783 = vmul.f32 %v767, %v767
  %v784 = vmul.f32 %v768, %v768
  %v785 = vmul.f32 %v769, %v769
  %v786 = vmul.f32 %v770, %v770
  %v787 = vmul.f32 %v771, %v771
  %v788 = vmul.f32 %v772, %v772
  %v789 = vadd.f32 %v673, %v773
  %v790 = vadd.f32 %v674, %v774
  %v791 = vadd.f32 %v675, %v775
  %v792 = vadd.f32 %v676, %v776
  %v793 = vadd.f32 %v677, %v777
  %v794 = vadd.f32 %v678, %v778
  %v795 = vadd.f32 %v679, %v779
  %v796 = vadd.f32 %v680, %v780
  %v797 = vadd.f32 %v681, %v781
  %v798 = vadd.f32 %v682, %v782
  %v799 = vadd.f32 %v683, %v783
  %v800 = vadd.f32 %v684, %v784
  %v801 = vadd.f32 %v685, %v785
  %v802 = vadd.f32 %v686, %v786
  %v803 = vadd.f32 %v687, %v787
  %v804 = vadd.f32 %v688, %v788
  %vm805 = vcmp.gt.f32.partialorder %v789, 0.0224999
  %vm806 = vcmp.gt.f32.partialorder %v790, 0.0224999
  %vm807 = vcmp.gt.f32.partialorder %v791, 0.0224999
  %vm808 = vcmp.gt.f32.partialorder %v792, 0.0224999
  %vm809 = vcmp.gt.f32.partialorder %v793, 0.0224999
  %vm810 = vcmp.gt.f32.partialorder %v794, 0.0224999
  %vm811 = vcmp.gt.f32.partialorder %v795, 0.0224999
  %vm812 = vcmp.gt.f32.partialorder %v796, 0.0224999
  %vm813 = vcmp.gt.f32.partialorder %v797, 0.0224999
  %vm814 = vcmp.gt.f32.partialorder %v798, 0.0224999
  %vm815 = vcmp.gt.f32.partialorder %v799, 0.0224999
  %vm816 = vcmp.gt.f32.partialorder %v800, 0.0224999
  %vm817 = vcmp.gt.f32.partialorder %v801, 0.0224999
  %vm818 = vcmp.gt.f32.partialorder %v802, 0.0224999
  %vm819 = vcmp.gt.f32.partialorder %v803, 0.0224999
  %vm820 = vcmp.gt.f32.partialorder %v804, 0.0224999
  %v821 = vlaneseq
  %v822 = vand.u32 %v821, 127
  %s823 = smul.u32 0, 128
  %v824 = vstv %s823
  %v825 = vadd.s32 %v822, %v824
  %vm826 = vcmp.lt.s32.totalorder %v825, 16
  %v827 = vsel %vm826, 1, 0
  %vm828 = vcmp.eq.s32.totalorder %v827, 1
  %vm829 = vmand %vm805, %vm828
  %vm830 = vmand %vm806, %vm828
  %vm831 = vmand %vm807, %vm828
  %vm832 = vmand %vm808, %vm828
  %vm833 = vmand %vm809, %vm828
  %vm834 = vmand %vm810, %vm828
  %vm835 = vmand %vm811, %vm828
  %vm836 = vmand %vm812, %vm828
  %vm837 = vmand %vm813, %vm828
  %vm838 = vmand %vm814, %vm828
  %vm839 = vmand %vm815, %vm828
  %vm840 = vmand %vm816, %vm828
  %vm841 = vmand %vm817, %vm828
  %vm842 = vmand %vm818, %vm828
  %vm843 = vmand %vm819, %vm828
  %vm844 = vmand %vm820, %vm828
  %v845 = vld [vmem:[#allocation2] sm:$0xff]
  %v846 = vld [vmem:[#allocation2 + $0x8] sm:$0xff]
  %v847 = vld [vmem:[#allocation2 + $0x10] sm:$0xff]
  %v848 = vld [vmem:[#allocation2 + $0x18] sm:$0xff]
  %v849 = vld [vmem:[#allocation2 + $0x20] sm:$0xff]
  %v850 = vld [vmem:[#allocation2 + $0x28] sm:$0xff]
  %v851 = vld [vmem:[#allocation2 + $0x30] sm:$0xff]
  %v852 = vld [vmem:[#allocation2 + $0x38] sm:$0xff]
  %v853 = vld [vmem:[#allocation2 + $0x40] sm:$0xff]
  %v854 = vld [vmem:[#allocation2 + $0x48] sm:$0xff]
  %v855 = vld [vmem:[#allocation2 + $0x50] sm:$0xff]
  %v856 = vld [vmem:[#allocation2 + $0x58] sm:$0xff]
  %v857 = vld [vmem:[#allocation2 + $0x60] sm:$0xff]
  %v858 = vld [vmem:[#allocation2 + $0x68] sm:$0xff]
  %v859 = vld [vmem:[#allocation2 + $0x70] sm:$0xff]
  %v860 = vld [vmem:[#allocation2 + $0x78] sm:$0xff]
  %v861 = vsel %vm829, %v424, 1e+30
  %v862 = vsel %vm830, %v425, 1e+30
  %v863 = vsel %vm831, %v426, 1e+30
  %v864 = vsel %vm832, %v427, 1e+30
  %v865 = vsel %vm833, %v428, 1e+30
  %v866 = vsel %vm834, %v429, 1e+30
  %v867 = vsel %vm835, %v430, 1e+30
  %v868 = vsel %vm836, %v431, 1e+30
  %v869 = vsel %vm837, %v432, 1e+30
  %v870 = vsel %vm838, %v433, 1e+30
  %v871 = vsel %vm839, %v434, 1e+30
  %v872 = vsel %vm840, %v435, 1e+30
  %v873 = vsel %vm841, %v436, 1e+30
  %v874 = vsel %vm842, %v437, 1e+30
  %v875 = vsel %vm843, %v438, 1e+30
  %v876 = vsel %vm844, %v439, 1e+30
  %877 = vmin.xlane.f32.xlu0 %v861
  %v878 = vpop.xlane.xlu0 %877
  %879 = vmin.xlane.f32.xlu0 %v862
  %v880 = vpop.xlane.xlu0 %879
  %881 = vmin.xlane.f32.xlu0 %v863
  %v882 = vpop.xlane.xlu0 %881
  %883 = vmin.xlane.f32.xlu0 %v864
  %v884 = vpop.xlane.xlu0 %883
  %885 = vmin.xlane.f32.xlu0 %v865
  %v886 = vpop.xlane.xlu0 %885
  %887 = vmin.xlane.f32.xlu0 %v866
  %v888 = vpop.xlane.xlu0 %887
  %889 = vmin.xlane.f32.xlu0 %v867
  %v890 = vpop.xlane.xlu0 %889
  %891 = vmin.xlane.f32.xlu0 %v868
  %v892 = vpop.xlane.xlu0 %891
  %893 = vmin.xlane.f32.xlu0 %v869
  %v894 = vpop.xlane.xlu0 %893
  %895 = vmin.xlane.f32.xlu0 %v870
  %v896 = vpop.xlane.xlu0 %895
  %897 = vmin.xlane.f32.xlu0 %v871
  %v898 = vpop.xlane.xlu0 %897
  %899 = vmin.xlane.f32.xlu0 %v872
  %v900 = vpop.xlane.xlu0 %899
  %901 = vmin.xlane.f32.xlu0 %v873
  %v902 = vpop.xlane.xlu0 %901
  %903 = vmin.xlane.f32.xlu0 %v874
  %v904 = vpop.xlane.xlu0 %903
  %905 = vmin.xlane.f32.xlu0 %v875
  %v906 = vpop.xlane.xlu0 %905
  %907 = vmin.xlane.f32.xlu0 %v876
  %v908 = vpop.xlane.xlu0 %907
  %v909 = vmin.f32 %v845, %v878
  %v910 = vmin.f32 %v846, %v880
  %v911 = vmin.f32 %v847, %v882
  %v912 = vmin.f32 %v848, %v884
  %v913 = vmin.f32 %v849, %v886
  %v914 = vmin.f32 %v850, %v888
  %v915 = vmin.f32 %v851, %v890
  %v916 = vmin.f32 %v852, %v892
  %v917 = vmin.f32 %v853, %v894
  %v918 = vmin.f32 %v854, %v896
  %v919 = vmin.f32 %v855, %v898
  %v920 = vmin.f32 %v856, %v900
  %v921 = vmin.f32 %v857, %v902
  %v922 = vmin.f32 %v858, %v904
  %v923 = vmin.f32 %v859, %v906
  %v924 = vmin.f32 %v860, %v908
  %vm925 = vcmask 7168
  %926 = vst.msk [vmem:[#allocation2] sm:$0xff] %vm925, %v909
  %927 = vst.msk [vmem:[#allocation2 + $0x8] sm:$0xff] %vm925, %v910
  %928 = vst.msk [vmem:[#allocation2 + $0x10] sm:$0xff] %vm925, %v911
  %929 = vst.msk [vmem:[#allocation2 + $0x18] sm:$0xff] %vm925, %v912
  %930 = vst.msk [vmem:[#allocation2 + $0x20] sm:$0xff] %vm925, %v913
  %931 = vst.msk [vmem:[#allocation2 + $0x28] sm:$0xff] %vm925, %v914
  %932 = vst.msk [vmem:[#allocation2 + $0x30] sm:$0xff] %vm925, %v915
  %933 = vst.msk [vmem:[#allocation2 + $0x38] sm:$0xff] %vm925, %v916
  %934 = vst.msk [vmem:[#allocation2 + $0x40] sm:$0xff] %vm925, %v917
  %935 = vst.msk [vmem:[#allocation2 + $0x48] sm:$0xff] %vm925, %v918
  %936 = vst.msk [vmem:[#allocation2 + $0x50] sm:$0xff] %vm925, %v919
  %937 = vst.msk [vmem:[#allocation2 + $0x58] sm:$0xff] %vm925, %v920
  %938 = vst.msk [vmem:[#allocation2 + $0x60] sm:$0xff] %vm925, %v921
  %939 = vst.msk [vmem:[#allocation2 + $0x68] sm:$0xff] %vm925, %v922
  %940 = vst.msk [vmem:[#allocation2 + $0x70] sm:$0xff] %vm925, %v923
  %941 = vst.msk [vmem:[#allocation2 + $0x78] sm:$0xff] %vm925, %v924
  // Predicated region
  $region34: #{tpu_custom_call.1} parent=0 // pred_check
    %p942 = pneg %p27
  $region35: #{tpu_custom_call.1} parent=0 // pred_check_branch
    %944 = sbr.rel (%p942) target = $region37
  $region36: #{tpu_custom_call.1} parent=0 // pred_region
    %v945 = vld [vmem:[%s0] sm:$0xf]
    %v946 = vld [vmem:[%s0 + $0x4] sm:$0xf]
    %v947 = vld [vmem:[%s0 + $0x8] sm:$0xf]
    %v948 = vld [vmem:[%s0 + $0xc] sm:$0xf]
    %v949 = vld [vmem:[%s0 + $0x10] sm:$0xf]
    %v950 = vld [vmem:[%s0 + $0x14] sm:$0xf]
    %v951 = vld [vmem:[%s0 + $0x18] sm:$0xf]
    %v952 = vld [vmem:[%s0 + $0x1c] sm:$0xf]
    %v953 = vld [vmem:[%s0 + $0x20] sm:$0xf]
    %v954 = vld [vmem:[%s0 + $0x24] sm:$0xf]
    %v955 = vld [vmem:[%s0 + $0x28] sm:$0xf]
    %v956 = vld [vmem:[%s0 + $0x2c] sm:$0xf]
    %v957 = vld [vmem:[%s0 + $0x30] sm:$0xf]
    %v958 = vld [vmem:[%s0 + $0x34] sm:$0xf]
    %v959 = vld [vmem:[%s0 + $0x38] sm:$0xf]
    %v960 = vld [vmem:[%s0 + $0x3c] sm:$0xf]
    %v961 = vunpack.c.l.bf16 %v945
    %v962 = vunpack.c.l.bf16 %v946
    %v963 = vunpack.c.l.bf16 %v947
    %v964 = vunpack.c.l.bf16 %v948
    %v965 = vunpack.c.l.bf16 %v949
    %v966 = vunpack.c.l.bf16 %v950
    %v967 = vunpack.c.l.bf16 %v951
    %v968 = vunpack.c.l.bf16 %v952
    %v969 = vunpack.c.l.bf16 %v953
    %v970 = vunpack.c.l.bf16 %v954
    %v971 = vunpack.c.l.bf16 %v955
    %v972 = vunpack.c.l.bf16 %v956
    %v973 = vunpack.c.l.bf16 %v957
    %v974 = vunpack.c.l.bf16 %v958
    %v975 = vunpack.c.l.bf16 %v959
    %v976 = vunpack.c.l.bf16 %v960
    %v977 = vld [vmem:[%s1] sm:$0xf]
    %v978 = vld [vmem:[%s1 + $0x4] sm:$0xf]
    %v979 = vld [vmem:[%s1 + $0x8] sm:$0xf]
    %v980 = vld [vmem:[%s1 + $0xc] sm:$0xf]
    %v981 = vld [vmem:[%s1 + $0x10] sm:$0xf]
    %v982 = vld [vmem:[%s1 + $0x14] sm:$0xf]
    %v983 = vld [vmem:[%s1 + $0x18] sm:$0xf]
    %v984 = vld [vmem:[%s1 + $0x1c] sm:$0xf]
    %v985 = vld [vmem:[%s1 + $0x20] sm:$0xf]
    %v986 = vld [vmem:[%s1 + $0x24] sm:$0xf]
    %v987 = vld [vmem:[%s1 + $0x28] sm:$0xf]
    %v988 = vld [vmem:[%s1 + $0x2c] sm:$0xf]
    %v989 = vld [vmem:[%s1 + $0x30] sm:$0xf]
    %v990 = vld [vmem:[%s1 + $0x34] sm:$0xf]
    %v991 = vld [vmem:[%s1 + $0x38] sm:$0xf]
    %v992 = vld [vmem:[%s1 + $0x3c] sm:$0xf]
    %v993 = vunpack.c.l.bf16 %v977
    %v994 = vunpack.c.l.bf16 %v978
    %v995 = vunpack.c.l.bf16 %v979
    %v996 = vunpack.c.l.bf16 %v980
    %v997 = vunpack.c.l.bf16 %v981
    %v998 = vunpack.c.l.bf16 %v982
    %v999 = vunpack.c.l.bf16 %v983
    %v1000 = vunpack.c.l.bf16 %v984
    %v1001 = vunpack.c.l.bf16 %v985
    %v1002 = vunpack.c.l.bf16 %v986
    %v1003 = vunpack.c.l.bf16 %v987
    %v1004 = vunpack.c.l.bf16 %v988
    %v1005 = vunpack.c.l.bf16 %v989
    %v1006 = vunpack.c.l.bf16 %v990
    %v1007 = vunpack.c.l.bf16 %v991
    %v1008 = vunpack.c.l.bf16 %v992
    %v1009 = vsub.f32 %v961, %v993
    %v1010 = vsub.f32 %v962, %v994
    %v1011 = vsub.f32 %v963, %v995
    %v1012 = vsub.f32 %v964, %v996
    %v1013 = vsub.f32 %v965, %v997
    %v1014 = vsub.f32 %v966, %v998
    %v1015 = vsub.f32 %v967, %v999
    %v1016 = vsub.f32 %v968, %v1000
    %v1017 = vsub.f32 %v969, %v1001
    %v1018 = vsub.f32 %v970, %v1002
    %v1019 = vsub.f32 %v971, %v1003
    %v1020 = vsub.f32 %v972, %v1004
    %v1021 = vsub.f32 %v973, %v1005
    %v1022 = vsub.f32 %v974, %v1006
    %v1023 = vsub.f32 %v975, %v1007
    %v1024 = vsub.f32 %v976, %v1008
    %v1025 = vmul.f32 %v1009, %v1009
    %v1026 = vmul.f32 %v1010, %v1010
    %v1027 = vmul.f32 %v1011, %v1011
    %v1028 = vmul.f32 %v1012, %v1012
    %v1029 = vmul.f32 %v1013, %v1013
    %v1030 = vmul.f32 %v1014, %v1014
    %v1031 = vmul.f32 %v1015, %v1015
    %v1032 = vmul.f32 %v1016, %v1016
    %v1033 = vmul.f32 %v1017, %v1017
    %v1034 = vmul.f32 %v1018, %v1018
    %v1035 = vmul.f32 %v1019, %v1019
    %v1036 = vmul.f32 %v1020, %v1020
    %v1037 = vmul.f32 %v1021, %v1021
    %v1038 = vmul.f32 %v1022, %v1022
    %v1039 = vmul.f32 %v1023, %v1023
    %v1040 = vmul.f32 %v1024, %v1024
    %1041 = vmax.xlane.f32.xlu0 %v1025
    %v1042 = vpop.xlane.xlu0 %1041
    %1043 = vmax.xlane.f32.xlu0 %v1026
    %v1044 = vpop.xlane.xlu0 %1043
    %1045 = vmax.xlane.f32.xlu0 %v1027
    %v1046 = vpop.xlane.xlu0 %1045
    %1047 = vmax.xlane.f32.xlu0 %v1028
    %v1048 = vpop.xlane.xlu0 %1047
    %1049 = vmax.xlane.f32.xlu0 %v1029
    %v1050 = vpop.xlane.xlu0 %1049
    %1051 = vmax.xlane.f32.xlu0 %v1030
    %v1052 = vpop.xlane.xlu0 %1051
    %1053 = vmax.xlane.f32.xlu0 %v1031
    %v1054 = vpop.xlane.xlu0 %1053
    %1055 = vmax.xlane.f32.xlu0 %v1032
    %v1056 = vpop.xlane.xlu0 %1055
    %1057 = vmax.xlane.f32.xlu0 %v1033
    %v1058 = vpop.xlane.xlu0 %1057
    %1059 = vmax.xlane.f32.xlu0 %v1034
    %v1060 = vpop.xlane.xlu0 %1059
    %1061 = vmax.xlane.f32.xlu0 %v1035
    %v1062 = vpop.xlane.xlu0 %1061
    %1063 = vmax.xlane.f32.xlu0 %v1036
    %v1064 = vpop.xlane.xlu0 %1063
    %1065 = vmax.xlane.f32.xlu0 %v1037
    %v1066 = vpop.xlane.xlu0 %1065
    %1067 = vmax.xlane.f32.xlu0 %v1038
    %v1068 = vpop.xlane.xlu0 %1067
    %1069 = vmax.xlane.f32.xlu0 %v1039
    %v1070 = vpop.xlane.xlu0 %1069
    %1071 = vmax.xlane.f32.xlu0 %v1040
    %v1072 = vpop.xlane.xlu0 %1071
    %v1073 = vsub.f32 %v1042, 0.1
    %v1074 = vsub.f32 %v1044, 0.1
    %v1075 = vsub.f32 %v1046, 0.1
    %v1076 = vsub.f32 %v1048, 0.1
    %v1077 = vsub.f32 %v1050, 0.1
    %v1078 = vsub.f32 %v1052, 0.1
    %v1079 = vsub.f32 %v1054, 0.1
    %v1080 = vsub.f32 %v1056, 0.1
    %v1081 = vsub.f32 %v1058, 0.1
    %v1082 = vsub.f32 %v1060, 0.1
    %v1083 = vsub.f32 %v1062, 0.1
    %v1084 = vsub.f32 %v1064, 0.1
    %v1085 = vsub.f32 %v1066, 0.1
    %v1086 = vsub.f32 %v1068, 0.1
    %v1087 = vsub.f32 %v1070, 0.1
    %v1088 = vsub.f32 %v1072, 0.1
    %v1089 = vmax.f32 %v1073, 0.0
    %v1090 = vmax.f32 %v1074, 0.0
    %v1091 = vmax.f32 %v1075, 0.0
    %v1092 = vmax.f32 %v1076, 0.0
    %v1093 = vmax.f32 %v1077, 0.0
    %v1094 = vmax.f32 %v1078, 0.0
    %v1095 = vmax.f32 %v1079, 0.0
    %v1096 = vmax.f32 %v1080, 0.0
    %v1097 = vmax.f32 %v1081, 0.0
    %v1098 = vmax.f32 %v1082, 0.0
    %v1099 = vmax.f32 %v1083, 0.0
    %v1100 = vmax.f32 %v1084, 0.0
    %v1101 = vmax.f32 %v1085, 0.0
    %v1102 = vmax.f32 %v1086, 0.0
    %v1103 = vmax.f32 %v1087, 0.0
    %v1104 = vmax.f32 %v1088, 0.0
    %v1105 = vmul.f32 %v1089, %v1089
    %v1106 = vmul.f32 %v1090, %v1090
    %v1107 = vmul.f32 %v1091, %v1091
    %v1108 = vmul.f32 %v1092, %v1092
    %v1109 = vmul.f32 %v1093, %v1093
    %v1110 = vmul.f32 %v1094, %v1094
    %v1111 = vmul.f32 %v1095, %v1095
    %v1112 = vmul.f32 %v1096, %v1096
    %v1113 = vmul.f32 %v1097, %v1097
    %v1114 = vmul.f32 %v1098, %v1098
    %v1115 = vmul.f32 %v1099, %v1099
    %v1116 = vmul.f32 %v1100, %v1100
    %v1117 = vmul.f32 %v1101, %v1101
    %v1118 = vmul.f32 %v1102, %v1102
    %v1119 = vmul.f32 %v1103, %v1103
    %v1120 = vmul.f32 %v1104, %v1104
    %v1121 = vld [vmem:[#allocation2] sm:$0xff]
    %v1122 = vld [vmem:[#allocation2 + $0x8] sm:$0xff]
    %v1123 = vld [vmem:[#allocation2 + $0x10] sm:$0xff]
    %v1124 = vld [vmem:[#allocation2 + $0x18] sm:$0xff]
    %v1125 = vld [vmem:[#allocation2 + $0x20] sm:$0xff]
    %v1126 = vld [vmem:[#allocation2 + $0x28] sm:$0xff]
    %v1127 = vld [vmem:[#allocation2 + $0x30] sm:$0xff]
    %v1128 = vld [vmem:[#allocation2 + $0x38] sm:$0xff]
    %v1129 = vld [vmem:[#allocation2 + $0x40] sm:$0xff]
    %v1130 = vld [vmem:[#allocation2 + $0x48] sm:$0xff]
    %v1131 = vld [vmem:[#allocation2 + $0x50] sm:$0xff]
    %v1132 = vld [vmem:[#allocation2 + $0x58] sm:$0xff]
    %v1133 = vld [vmem:[#allocation2 + $0x60] sm:$0xff]
    %v1134 = vld [vmem:[#allocation2 + $0x68] sm:$0xff]
    %v1135 = vld [vmem:[#allocation2 + $0x70] sm:$0xff]
    %v1136 = vld [vmem:[#allocation2 + $0x78] sm:$0xff]
    %v1137 = vsub.f32 1.4, %v1121
    %v1138 = vsub.f32 1.4, %v1122
    %v1139 = vsub.f32 1.4, %v1123
    %v1140 = vsub.f32 1.4, %v1124
    %v1141 = vsub.f32 1.4, %v1125
    %v1142 = vsub.f32 1.4, %v1126
    %v1143 = vsub.f32 1.4, %v1127
    %v1144 = vsub.f32 1.4, %v1128
    %v1145 = vsub.f32 1.4, %v1129
    %v1146 = vsub.f32 1.4, %v1130
    %v1147 = vsub.f32 1.4, %v1131
    %v1148 = vsub.f32 1.4, %v1132
    %v1149 = vsub.f32 1.4, %v1133
    %v1150 = vsub.f32 1.4, %v1134
    %v1151 = vsub.f32 1.4, %v1135
    %v1152 = vsub.f32 1.4, %v1136
    %v1153 = vmax.f32 %v1137, 0.0
    %v1154 = vmax.f32 %v1138, 0.0
    %v1155 = vmax.f32 %v1139, 0.0
    %v1156 = vmax.f32 %v1140, 0.0
    %v1157 = vmax.f32 %v1141, 0.0
    %v1158 = vmax.f32 %v1142, 0.0
    %v1159 = vmax.f32 %v1143, 0.0
    %v1160 = vmax.f32 %v1144, 0.0
    %v1161 = vmax.f32 %v1145, 0.0
    %v1162 = vmax.f32 %v1146, 0.0
    %v1163 = vmax.f32 %v1147, 0.0
    %v1164 = vmax.f32 %v1148, 0.0
    %v1165 = vmax.f32 %v1149, 0.0
    %v1166 = vmax.f32 %v1150, 0.0
    %v1167 = vmax.f32 %v1151, 0.0
    %v1168 = vmax.f32 %v1152, 0.0
    %v1169 = vmul.f32 %v1153, %v1153
    %v1170 = vmul.f32 %v1154, %v1154
    %v1171 = vmul.f32 %v1155, %v1155
    %v1172 = vmul.f32 %v1156, %v1156
    %v1173 = vmul.f32 %v1157, %v1157
    %v1174 = vmul.f32 %v1158, %v1158
    %v1175 = vmul.f32 %v1159, %v1159
    %v1176 = vmul.f32 %v1160, %v1160
    %v1177 = vmul.f32 %v1161, %v1161
    %v1178 = vmul.f32 %v1162, %v1162
    %v1179 = vmul.f32 %v1163, %v1163
    %v1180 = vmul.f32 %v1164, %v1164
    %v1181 = vmul.f32 %v1165, %v1165
    %v1182 = vmul.f32 %v1166, %v1166
    %v1183 = vmul.f32 %v1167, %v1167
    %v1184 = vmul.f32 %v1168, %v1168
    %v1185 = vadd.f32 %v1105, %v1169
    %v1186 = vadd.f32 %v1106, %v1170
    %v1187 = vadd.f32 %v1107, %v1171
    %v1188 = vadd.f32 %v1108, %v1172
    %v1189 = vadd.f32 %v1109, %v1173
    %v1190 = vadd.f32 %v1110, %v1174
    %v1191 = vadd.f32 %v1111, %v1175
    %v1192 = vadd.f32 %v1112, %v1176
    %v1193 = vadd.f32 %v1113, %v1177
    %v1194 = vadd.f32 %v1114, %v1178
    %v1195 = vadd.f32 %v1115, %v1179
    %v1196 = vadd.f32 %v1116, %v1180
    %v1197 = vadd.f32 %v1117, %v1181
    %v1198 = vadd.f32 %v1118, %v1182
    %v1199 = vadd.f32 %v1119, %v1183
    %v1200 = vadd.f32 %v1120, %v1184
    %1201 = vst.msk [vmem:[%s7] sm:$0xff] %vm925, %v1185
    %1202 = vst.msk [vmem:[%s7 + $0x8] sm:$0xff] %vm925, %v1186
    %1203 = vst.msk [vmem:[%s7 + $0x10] sm:$0xff] %vm925, %v1187
    %1204 = vst.msk [vmem:[%s7 + $0x18] sm:$0xff] %vm925, %v1188
    %1205 = vst.msk [vmem:[%s7 + $0x20] sm:$0xff] %vm925, %v1189
    %1206 = vst.msk [vmem:[%s7 + $0x28] sm:$0xff] %vm925, %v1190
    %1207 = vst.msk [vmem:[%s7 + $0x30] sm:$0xff] %vm925, %v1191
    %1208 = vst.msk [vmem:[%s7 + $0x38] sm:$0xff] %vm925, %v1192
    %1209 = vst.msk [vmem:[%s7 + $0x40] sm:$0xff] %vm925, %v1193
    %1210 = vst.msk [vmem:[%s7 + $0x48] sm:$0xff] %vm925, %v1194
    %1211 = vst.msk [vmem:[%s7 + $0x50] sm:$0xff] %vm925, %v1195
    %1212 = vst.msk [vmem:[%s7 + $0x58] sm:$0xff] %vm925, %v1196
    %1213 = vst.msk [vmem:[%s7 + $0x60] sm:$0xff] %vm925, %v1197
    %1214 = vst.msk [vmem:[%s7 + $0x68] sm:$0xff] %vm925, %v1198
    %1215 = vst.msk [vmem:[%s7 + $0x70] sm:$0xff] %vm925, %v1199
    %1216 = vst.msk [vmem:[%s7 + $0x78] sm:$0xff] %vm925, %v1200
  $region37: #{tpu_custom_call.1} parent=0 // pred_fallthru
    _
  // Predicated region
  $region38: #{tpu_custom_call.1} parent=0 // pred_check
    _
  $region39: #{tpu_custom_call.1} parent=0 // pred_check_branch
    %1218 = sbr.rel (0) target = $region41
  $region40: #{tpu_custom_call.1} parent=0 // pred_region
    _
  $region41: #{tpu_custom_call.1} parent=0 // pred_fallthru
    _
  // Predicated region
  $region42: #{tpu_custom_call.1} parent=0 // pred_check
    _
  $region43: #{tpu_custom_call.1} parent=0 // pred_check_branch
    %1220 = sbr.rel (0) target = $region45
  $region44: #{tpu_custom_call.1} parent=0 // pred_region
    _
  $region45: #{tpu_custom_call.1} parent=0 // pred_fallthru
    _

</llo_original>
